<compile_context>
chip_gen: v5e
topology: v5e:2x2
jax: 0.10.0
libtpu: 0.0.40
codegen_flags: <defaults>
</compile_context>

<pallas_src>
import jax
import jax.numpy as jnp
from jax import lax
from jax.experimental import pallas as pl
from jax.experimental.pallas import tpu as pltpu

# ---- constants from the original module ------------------------------------
E, X, Y, H = 0, 1, 2, 3            # [confidence, x, y, size]
CERCLE, TRIANGLE, CROIX = 4, 5, 6  # one-hot class slots
A_COEF = 1.0                       # self.A
B_COEF = 5.0                       # self.B = self.A * self.coef


# ---- Pallas kernel: one lane == one batch element ----------------------------
def _loss_kernel(o_ref, gt_ref, cls_ref, out_ref):
    """o_ref: (NBB, K, TB) output, batch on lanes
       gt_ref: (NBB, 4, TB) raw ground-truth rows target[:, j, 0:4]
       cls_ref: (NBB, TB)   raw ground-truth class ids target[:, j, 4]
       out_ref: (1, TB)     per-batch loss A*Lxywh + B*L_classes"""
    o = o_ref[...].astype(jnp.float32)
    gt = gt_ref[...].astype(jnp.float32)
    cls = cls_ref[...].astype(jnp.int32)          # trunc toward zero, like int()

    nbb, k, tb = o.shape

    # ---- fused target construction: row `classe` <- [box(4), one_hot] -------
    # Later j overwrites earlier (same as the PyTorch double loop); rows that
    # are never hit stay zero (torch.zeros_like).
    row_id = lax.broadcasted_iota(jnp.int32, (nbb, tb), 0)       # row index r
    built_box = jnp.zeros((nbb, 4, tb), jnp.float32)             # tgt[:, :, 0:4]
    present = jnp.zeros((nbb, tb), jnp.float32)                  # row r was set
    for j in range(nbb):                                         # static unroll
        hit = row_id == cls[j][None, :]                          # (NBB, TB)
        built_box = jnp.where(hit[:, None, :], gt[j][None, :, :], built_box)
        present = jnp.where(hit, 1.0, present)

    # ---- Lxywh: sum_j MSE(out[:, [X,Y,H]], tgt[:, [X,Y,H]]) = NBB*MSE -------
    bdiff = o[:, X:H + 1, :] - built_box[:, X:H + 1, :]          # (NBB, 3, TB)
    lxywh = jnp.sum(bdiff * bdiff, axis=(0, 1)) * (1.0 / 3.0)    # (TB,)

    # ---- L_classes: soft-target CE over the (4, NBB)-shaped gather ----------
    # per gathered column c: lse_c*sum_r(t) - sum_r(t*o), softmax over the NBB
    # box axis; mean over the 1+NBB gathered columns.
    # column E (confidence)
    o_e = o[:, E, :]                                             # (NBB, TB)
    t_e = built_box[:, E, :]
    m_e = jnp.max(o_e, axis=0)
    lse_e = m_e + jnp.log(jnp.sum(jnp.exp(o_e - m_e[None, :]), axis=0))
    ce_e = lse_e * jnp.sum(t_e, axis=0) - jnp.sum(t_e * o_e, axis=0)   # (TB,)

    # one-hot class-slot columns CERCLE .. CERCLE+NBB-1
    eye = (lax.broadcasted_iota(jnp.int32, (nbb, nbb, tb), 0) ==
           lax.broadcasted_iota(jnp.int32, (nbb, nbb, tb), 1))
    t_s = jnp.where(eye, present[:, None, :], 0.0)               # (NBB, NBB, TB)
    o_s = o[:, CERCLE:CERCLE + nbb, :]                           # (NBB, NBB, TB)
    m_s = jnp.max(o_s, axis=0)                                   # (NBB, TB)
    lse_s = m_s + jnp.log(jnp.sum(jnp.exp(o_s - m_s[None]), axis=0))
    ce_s = jnp.sum(lse_s * jnp.sum(t_s, axis=0)
                   - jnp.sum(t_s * o_s, axis=0), axis=0)         # (TB,)

    ce = (ce_e + ce_s) * (1.0 / (1.0 + nbb))

    out_ref[...] = (A_COEF * lxywh + B_COEF * ce)[None, :]


# ---- wrapper ------------------------------------------------------------------
def detection_network_loss(output, target, *, lanes=128, max_lane_tiles=8):
    """sum_b( A*Lxywh + B*L_classes ), matching the PyTorch module."""
    b, nbb, k = output.shape
    assert k == 4 + nbb, "feature dim must be 4 box values + NBB class slots"

    # Lane-dense layout: batch on the last (lane) axis, padded to a multiple
    # of TB lanes. TB grows (up to max_lane_tiles*128) for larger B so that a
    # single grid step amortizes the per-step pipeline overhead.
    tb = lanes * max(1, min(max_lane_tiles, pl.cdiv(b, lanes)))
    bp = pl.cdiv(b, tb) * tb
    n_blocks = bp // tb
    pad = bp - b

    o_l = jnp.transpose(output, (1, 2, 0))              # (NBB, K, B), no cast
    gt_l = jnp.transpose(target[..., 0:4], (1, 2, 0))   # (NBB, 4, B)
    cls_l = jnp.transpose(target[..., 4], (1, 0))       # (NBB, B)
    if pad:
        o_l = jnp.pad(o_l, ((0, 0), (0, 0), (0, pad)))
        gt_l = jnp.pad(gt_l, ((0, 0), (0, 0), (0, pad)))
        cls_l = jnp.pad(cls_l, ((0, 0), (0, pad)))

    partials = pl.pallas_call(
        _loss_kernel,
        out_shape=jax.ShapeDtypeStruct((1, bp), jnp.float32),
        grid_spec=pltpu.PrefetchScalarGridSpec(
            num_scalar_prefetch=0,
            grid=(n_blocks,),
            in_specs=[
                pl.BlockSpec((nbb, k, tb), lambda i: (0, 0, i)),
                pl.BlockSpec((nbb, 4, tb), lambda i: (0, 0, i)),
                pl.BlockSpec((nbb, tb), lambda i: (0, i)),
            ],
            out_specs=pl.BlockSpec((1, tb), lambda i: (0, i)),
        ),
        compiler_params=pltpu.CompilerParams(
            dimension_semantics=("parallel",)),   # independent blocks, no carry
    )(o_l, gt_l, cls_l)

    # Exclude padded lanes (their class id of 0 would otherwise contribute a
    # spurious one-hot row); final reduction stays in the wrapper.
    return jnp.sum(partials[0, :b])


# ---- pure-JAX reference (mirrors the PyTorch math) ---------------------------
def _build_target(output, target):
    b, nbb, kk = output.shape
    tgt = jnp.zeros((b, nbb, kk), jnp.float32)
    batch_idx = jnp.arange(b)
    for j in range(nbb):  # later j overwrites earlier, as in the PyTorch loop
        classe = target[:, j, 4].astype(jnp.int32)
        one_hot = jax.nn.one_hot(classe, nbb, dtype=jnp.float32)
        row = jnp.concatenate(
            [target[:, j, 0:4].astype(jnp.float32), one_hot], axis=-1)
        tgt = tgt.at[batch_idx, classe].set(row)
    return tgt


def _reference_loss(output, target):
    out = output.astype(jnp.float32)
    tgt = _build_target(output, target)
    b, nbb, kk = out.shape
    box = jnp.array([X, Y, H])
    cls = jnp.array([E, CERCLE, TRIANGLE, CROIX])
    mse = jnp.mean((out[:, :, box] - tgt[:, :, box]) ** 2, axis=(1, 2))
    lxywh = nbb * mse
    go = jnp.transpose(out[:, :, cls], (0, 2, 1))  # (B, 4, NBB) PyTorch gather
    gt = jnp.transpose(tgt[:, :, cls], (0, 2, 1))
    logsm = jax.nn.log_softmax(go, axis=-1)
    ce = jnp.mean(-jnp.sum(gt * logsm, axis=-1), axis=-1)
    return jnp.sum(A_COEF * lxywh + B_COEF * ce)


if __name__ == "__main__":
    def _make_inputs(key, b, nbb):
        kk = 4 + nbb
        k1, k2, k3 = jax.random.split(key, 3)
        out = jax.random.normal(k1, (b, nbb, kk), dtype=jnp.float32)
        boxes = jax.random.uniform(k2, (b, nbb, 4), dtype=jnp.float32)
        classes = jax.random.randint(k3, (b, nbb), 0, nbb).astype(jnp.float32)
        tgt = jnp.concatenate([boxes, classes[..., None]], axis=-1)  # (B,NBB,5)
        return out, tgt

    key = jax.random.PRNGKey(0)
    for i, b in enumerate((2, 5)):   # small batches, NBB=3 as in the module
        out_i, tgt_i = _make_inputs(jax.random.fold_in(key, i), b, 3)
        loss = jax.block_until_ready(detection_network_loss(out_i, tgt_i))
        ref = _reference_loss(out_i, tgt_i)
        assert jnp.allclose(loss, ref, rtol=1e-4, atol=1e-4), (b, loss, ref)
    print("KERNEL_OK")
</pallas_src>

<mosaic_0001>
module attributes {stable_mosaic.version = 11 : i64} {
  func.func @_loss_kernel(%arg0: i32, %arg1: memref<3x7x128xf32, #tpu.memory_space<vmem>>, %arg2: memref<3x4x128xf32, #tpu.memory_space<vmem>>, %arg3: memref<3x128xf32, #tpu.memory_space<vmem>>, %arg4: memref<1x128xf32, #tpu.memory_space<vmem>>) attributes {dimension_semantics = [#tpu.dimension_semantics<parallel>], iteration_bounds = array<i64: 1>, scalar_prefetch = 0 : i64, scratch_operands = 0 : i64, tpu.core_type = #tpu.core_type<tc>, window_params = [{transform_indices = @transform_0, window_bounds = array<i64: 3, 7, 128>}, {transform_indices = @transform_1, window_bounds = array<i64: 3, 4, 128>}, {transform_indices = @transform_2, window_bounds = array<i64: 3, 128>}, {transform_indices = @transform_3, window_bounds = array<i64: 1, 128>}]} {
    %c0 = arith.constant 0 : index
    %c0_0 = arith.constant 0 : index
    %c0_1 = arith.constant 0 : index
    %0 = vector.load %arg1[%c0, %c0_0, %c0_1] : memref<3x7x128xf32, #tpu.memory_space<vmem>>, vector<3x7x128xf32>
    %c0_2 = arith.constant 0 : index
    %c0_3 = arith.constant 0 : index
    %c0_4 = arith.constant 0 : index
    %1 = vector.load %arg2[%c0_2, %c0_3, %c0_4] : memref<3x4x128xf32, #tpu.memory_space<vmem>>, vector<3x4x128xf32>
    %c0_5 = arith.constant 0 : index
    %c0_6 = arith.constant 0 : index
    %2 = vector.load %arg3[%c0_5, %c0_6] : memref<3x128xf32, #tpu.memory_space<vmem>>, vector<3x128xf32>
    %3 = arith.fptosi %2 : vector<3x128xf32> to vector<3x128xi32>
    %4 = tpu.iota {dimensions = array<i32: 0>} : vector<3x128xi32>
    %cst = arith.constant 0.000000e+00 : f32
    %5 = vector.broadcast %cst : f32 to vector<3x4x128xf32>
    %cst_7 = arith.constant 0.000000e+00 : f32
    %6 = vector.broadcast %cst_7 : f32 to vector<3x128xf32>
    %7 = vector.extract_strided_slice %3 {offsets = [0, 0], sizes = [1, 128], strides = [1, 1]} : vector<3x128xi32> to vector<1x128xi32>
    %8 = vector.shape_cast %7 : vector<1x128xi32> to vector<128xi32>
    %9 = vector.shape_cast %8 : vector<128xi32> to vector<1x128xi32>
    %10 = vector.broadcast %9 : vector<1x128xi32> to vector<3x128xi32>
    %11 = arith.cmpi eq, %4, %10 : vector<3x128xi32>
    %12 = vector.shape_cast %11 : vector<3x128xi1> to vector<3x1x128xi1>
    %13 = vector.extract_strided_slice %1 {offsets = [0, 0, 0], sizes = [1, 4, 128], strides = [1, 1, 1]} : vector<3x4x128xf32> to vector<1x4x128xf32>
    %14 = vector.shape_cast %13 : vector<1x4x128xf32> to vector<4x128xf32>
    %15 = vector.shape_cast %14 : vector<4x128xf32> to vector<1x4x128xf32>
    %16 = vector.shape_cast %12 : vector<3x1x128xi1> to vector<3x1x128xi1>
    %17 = vector.broadcast %16 : vector<3x1x128xi1> to vector<3x4x128xi1>
    %18 = vector.shape_cast %15 : vector<1x4x128xf32> to vector<1x4x128xf32>
    %19 = vector.broadcast %18 : vector<1x4x128xf32> to vector<3x4x128xf32>
    %20 = arith.select %17, %19, %5 : vector<3x4x128xi1>, vector<3x4x128xf32>
    %cst_8 = arith.constant 1.000000e+00 : f32
    %21 = vector.broadcast %cst_8 : f32 to vector<3x128xf32>
    %22 = arith.select %11, %21, %6 : vector<3x128xi1>, vector<3x128xf32>
    %23 = vector.extract_strided_slice %3 {offsets = [1, 0], sizes = [1, 128], strides = [1, 1]} : vector<3x128xi32> to vector<1x128xi32>
    %24 = vector.shape_cast %23 : vector<1x128xi32> to vector<128xi32>
    %25 = vector.shape_cast %24 : vector<128xi32> to vector<1x128xi32>
    %26 = vector.broadcast %25 : vector<1x128xi32> to vector<3x128xi32>
    %27 = arith.cmpi eq, %4, %26 : vector<3x128xi32>
    %28 = vector.shape_cast %27 : vector<3x128xi1> to vector<3x1x128xi1>
    %29 = vector.extract_strided_slice %1 {offsets = [1, 0, 0], sizes = [1, 4, 128], strides = [1, 1, 1]} : vector<3x4x128xf32> to vector<1x4x128xf32>
    %30 = vector.shape_cast %29 : vector<1x4x128xf32> to vector<4x128xf32>
    %31 = vector.shape_cast %30 : vector<4x128xf32> to vector<1x4x128xf32>
    %32 = vector.shape_cast %28 : vector<3x1x128xi1> to vector<3x1x128xi1>
    %33 = vector.broadcast %32 : vector<3x1x128xi1> to vector<3x4x128xi1>
    %34 = vector.shape_cast %31 : vector<1x4x128xf32> to vector<1x4x128xf32>
    %35 = vector.broadcast %34 : vector<1x4x128xf32> to vector<3x4x128xf32>
    %36 = arith.select %33, %35, %20 : vector<3x4x128xi1>, vector<3x4x128xf32>
    %cst_9 = arith.constant 1.000000e+00 : f32
    %37 = vector.broadcast %cst_9 : f32 to vector<3x128xf32>
    %38 = arith.select %27, %37, %22 : vector<3x128xi1>, vector<3x128xf32>
    %39 = vector.extract_strided_slice %3 {offsets = [2, 0], sizes = [1, 128], strides = [1, 1]} : vector<3x128xi32> to vector<1x128xi32>
    %40 = vector.shape_cast %39 : vector<1x128xi32> to vector<128xi32>
    %41 = vector.shape_cast %40 : vector<128xi32> to vector<1x128xi32>
    %42 = vector.broadcast %41 : vector<1x128xi32> to vector<3x128xi32>
    %43 = arith.cmpi eq, %4, %42 : vector<3x128xi32>
    %44 = vector.shape_cast %43 : vector<3x128xi1> to vector<3x1x128xi1>
    %45 = vector.extract_strided_slice %1 {offsets = [2, 0, 0], sizes = [1, 4, 128], strides = [1, 1, 1]} : vector<3x4x128xf32> to vector<1x4x128xf32>
    %46 = vector.shape_cast %45 : vector<1x4x128xf32> to vector<4x128xf32>
    %47 = vector.shape_cast %46 : vector<4x128xf32> to vector<1x4x128xf32>
    %48 = vector.shape_cast %44 : vector<3x1x128xi1> to vector<3x1x128xi1>
    %49 = vector.broadcast %48 : vector<3x1x128xi1> to vector<3x4x128xi1>
    %50 = vector.shape_cast %47 : vector<1x4x128xf32> to vector<1x4x128xf32>
    %51 = vector.broadcast %50 : vector<1x4x128xf32> to vector<3x4x128xf32>
    %52 = arith.select %49, %51, %36 : vector<3x4x128xi1>, vector<3x4x128xf32>
    %cst_10 = arith.constant 1.000000e+00 : f32
    %53 = vector.broadcast %cst_10 : f32 to vector<3x128xf32>
    %54 = arith.select %43, %53, %38 : vector<3x128xi1>, vector<3x128xf32>
    %55 = vector.extract_strided_slice %0 {offsets = [0, 1, 0], sizes = [3, 3, 128], strides = [1, 1, 1]} : vector<3x7x128xf32> to vector<3x3x128xf32>
    %56 = vector.extract_strided_slice %52 {offsets = [0, 1, 0], sizes = [3, 3, 128], strides = [1, 1, 1]} : vector<3x4x128xf32> to vector<3x3x128xf32>
    %57 = arith.subf %55, %56 : vector<3x3x128xf32>
    %58 = arith.mulf %57, %57 : vector<3x3x128xf32>
    %cst_11 = arith.constant dense<0.000000e+00> : vector<128xf32>
    %59 = vector.multi_reduction <add>, %58, %cst_11 [0, 1] : vector<3x3x128xf32> to vector<128xf32>
    %cst_12 = arith.constant 0.333333343 : f32
    %60 = vector.broadcast %cst_12 : f32 to vector<128xf32>
    %61 = arith.mulf %59, %60 : vector<128xf32>
    %62 = vector.extract_strided_slice %0 {offsets = [0, 0, 0], sizes = [3, 1, 128], strides = [1, 1, 1]} : vector<3x7x128xf32> to vector<3x1x128xf32>
    %63 = vector.shape_cast %62 : vector<3x1x128xf32> to vector<3x128xf32>
    %64 = vector.extract_strided_slice %52 {offsets = [0, 0, 0], sizes = [3, 1, 128], strides = [1, 1, 1]} : vector<3x4x128xf32> to vector<3x1x128xf32>
    %65 = vector.shape_cast %64 : vector<3x1x128xf32> to vector<3x128xf32>
    %cst_13 = arith.constant dense<0xFF800000> : vector<128xf32>
    %66 = vector.multi_reduction <maximumf>, %63, %cst_13 [0] : vector<3x128xf32> to vector<128xf32>
    %67 = vector.shape_cast %66 : vector<128xf32> to vector<1x128xf32>
    %68 = vector.broadcast %67 : vector<1x128xf32> to vector<3x128xf32>
    %69 = arith.subf %63, %68 : vector<3x128xf32>
    %70 = math.exp %69 : vector<3x128xf32>
    %cst_14 = arith.constant dense<0.000000e+00> : vector<128xf32>
    %71 = vector.multi_reduction <add>, %70, %cst_14 [0] : vector<3x128xf32> to vector<128xf32>
    %72 = math.log %71 : vector<128xf32>
    %73 = arith.addf %66, %72 : vector<128xf32>
    %cst_15 = arith.constant dense<0.000000e+00> : vector<128xf32>
    %74 = vector.multi_reduction <add>, %65, %cst_15 [0] : vector<3x128xf32> to vector<128xf32>
    %75 = arith.mulf %73, %74 : vector<128xf32>
    %76 = arith.mulf %65, %63 : vector<3x128xf32>
    %cst_16 = arith.constant dense<0.000000e+00> : vector<128xf32>
    %77 = vector.multi_reduction <add>, %76, %cst_16 [0] : vector<3x128xf32> to vector<128xf32>
    %78 = arith.subf %75, %77 : vector<128xf32>
    %79 = tpu.iota {dimensions = array<i32: 0>} : vector<3x3x128xi32>
    %80 = tpu.iota {dimensions = array<i32: 1>} : vector<3x3x128xi32>
    %81 = arith.cmpi eq, %79, %80 : vector<3x3x128xi32>
    %82 = vector.shape_cast %54 : vector<3x128xf32> to vector<3x1x128xf32>
    %cst_17 = arith.constant 0.000000e+00 : f32
    %83 = vector.shape_cast %82 : vector<3x1x128xf32> to vector<3x1x128xf32>
    %84 = vector.broadcast %83 : vector<3x1x128xf32> to vector<3x3x128xf32>
    %85 = vector.broadcast %cst_17 : f32 to vector<3x3x128xf32>
    %86 = arith.select %81, %84, %85 : vector<3x3x128xi1>, vector<3x3x128xf32>
    %87 = vector.extract_strided_slice %0 {offsets = [0, 4, 0], sizes = [3, 3, 128], strides = [1, 1, 1]} : vector<3x7x128xf32> to vector<3x3x128xf32>
    %cst_18 = arith.constant dense<0xFF800000> : vector<3x128xf32>
    %88 = vector.multi_reduction <maximumf>, %87, %cst_18 [0] : vector<3x3x128xf32> to vector<3x128xf32>
    %89 = vector.shape_cast %88 : vector<3x128xf32> to vector<1x3x128xf32>
    %90 = vector.broadcast %89 : vector<1x3x128xf32> to vector<3x3x128xf32>
    %91 = arith.subf %87, %90 : vector<3x3x128xf32>
    %92 = math.exp %91 : vector<3x3x128xf32>
    %cst_19 = arith.constant dense<0.000000e+00> : vector<3x128xf32>
    %93 = vector.multi_reduction <add>, %92, %cst_19 [0] : vector<3x3x128xf32> to vector<3x128xf32>
    %94 = math.log %93 : vector<3x128xf32>
    %95 = arith.addf %88, %94 : vector<3x128xf32>
    %cst_20 = arith.constant dense<0.000000e+00> : vector<3x128xf32>
    %96 = vector.multi_reduction <add>, %86, %cst_20 [0] : vector<3x3x128xf32> to vector<3x128xf32>
    %97 = arith.mulf %95, %96 : vector<3x128xf32>
    %98 = arith.mulf %86, %87 : vector<3x3x128xf32>
    %cst_21 = arith.constant dense<0.000000e+00> : vector<3x128xf32>
    %99 = vector.multi_reduction <add>, %98, %cst_21 [0] : vector<3x3x128xf32> to vector<3x128xf32>
    %100 = arith.subf %97, %99 : vector<3x128xf32>
    %cst_22 = arith.constant dense<0.000000e+00> : vector<128xf32>
    %101 = vector.multi_reduction <add>, %100, %cst_22 [0] : vector<3x128xf32> to vector<128xf32>
    %102 = arith.addf %78, %101 : vector<128xf32>
    %cst_23 = arith.constant 2.500000e-01 : f32
    %103 = vector.broadcast %cst_23 : f32 to vector<128xf32>
    %104 = arith.mulf %102, %103 : vector<128xf32>
    %cst_24 = arith.constant 1.000000e+00 : f32
    %105 = vector.broadcast %cst_24 : f32 to vector<128xf32>
    %106 = arith.mulf %105, %61 : vector<128xf32>
    %cst_25 = arith.constant 5.000000e+00 : f32
    %107 = vector.broadcast %cst_25 : f32 to vector<128xf32>
    %108 = arith.mulf %107, %104 : vector<128xf32>
    %109 = arith.addf %106, %108 : vector<128xf32>
    %110 = vector.shape_cast %109 : vector<128xf32> to vector<1x128xf32>
    %c0_26 = arith.constant 0 : index
    %c0_27 = arith.constant 0 : index
    %111 = vector.load %arg4[%c0_26, %c0_27] : memref<1x128xf32, #tpu.memory_space<vmem>>, vector<1x128xf32>
    tpu.vector_store %arg4[%c0_26, %c0_27], %110 {strides = array<i32>} : memref<1x128xf32, #tpu.memory_space<vmem>>, vector<1x128xf32>,
    return
  }
  func.func @transform_0(%arg0: i32) -> (i32, i32, i32) {
    %c0_i32 = arith.constant 0 : i32
    %c0_i32_0 = arith.constant 0 : i32
    %c0_i32_1 = arith.constant 0 : i32
    return %c0_i32, %c0_i32_0, %arg0 : i32, i32, i32
  }
  func.func @transform_1(%arg0: i32) -> (i32, i32, i32) {
    %c0_i32 = arith.constant 0 : i32
    %c0_i32_0 = arith.constant 0 : i32
    %c0_i32_1 = arith.constant 0 : i32
    return %c0_i32, %c0_i32_0, %arg0 : i32, i32, i32
  }
  func.func @transform_2(%arg0: i32) -> (i32, i32) {
    %c0_i32 = arith.constant 0 : i32
    %c0_i32_0 = arith.constant 0 : i32
    return %c0_i32, %arg0 : i32, i32
  }
  func.func @transform_3(%arg0: i32) -> (i32, i32) {
    %c0_i32 = arith.constant 0 : i32
    %c0_i32_0 = arith.constant 0 : i32
    return %c0_i32, %arg0 : i32, i32
  }
}

</mosaic_0001>

<llo_original>
// kernel: tpu_custom_call.1
$region0: #{tpu_custom_call.1}
  #allocation0 [shape = 'u32[]', space=smem, size = 0x4, offset = 0x4, fixed_abs, tag = 'smem constant byte address 0x4 - core index']
  #allocation1 [shape = 'u32[72,128]{1,0:T(1,128)}', space=vmem, size = 0x9000, scoped, tag = 'internal scratch']
  %s0 = inlined_call_operand.hbm [shape: f32[3,7,128], index: 0, kind: input, shape index: {}]
  %s1 = inlined_call_operand.hbm [shape: f32[3,4,128], index: 1, kind: input, shape index: {}]
  %s2 = inlined_call_operand.hbm [shape: f32[3,128], index: 2, kind: input, shape index: {}]
  %s3 = inlined_call_operand.hbm [shape: f32[1,128], index: 3, kind: output, shape index: {}]
  %s4 = sld [smem:[#allocation0]]
  $region34: #{tpu_custom_call.1} parent=0
    _
  %s6 = ssub.s32 1, %s4
  %s7 = scalar_select 0, %s6, %s4
  $region1: #{tpu_custom_call.1} parent=0
    #allocation2 [shape = 'u8[12288]{0}', space=vmem, size = 0x3000, scoped, tag = 'input window, operand 0, single buffered']
    #allocation3 [shape = 's32[1]{0}', space=sflag, size = 0x4, scoped, tag = 'scoped memory for tpu_custom_call.1']
    #allocation4 [shape = 's32[1]{0}', space=sflag, size = 0x4, scoped, tag = 'scoped memory for tpu_custom_call.1']
    #allocation5 [shape = 'u8[6144]{0}', space=vmem, size = 0x1800, scoped, tag = 'input window, operand 1, single buffered']
    #allocation6 [shape = 's32[1]{0}', space=sflag, size = 0x4, scoped, tag = 'scoped memory for tpu_custom_call.1']
    #allocation7 [shape = 'u8[2048]{0}', space=vmem, size = 0x800, scoped, tag = 'input window, operand 2, single buffered']
    #allocation8 [shape = 'u8[512]{0}', space=vmem, size = 0x400, scoped, tag = 'output window, operand 0, single buffered']
    %8 = vsyncpa [#allocation3], 0
    %9 = vsyncpa [#allocation6], 0
    %10 = vsyncpa [#allocation4], 0
    // Predicated region
    $region2: #{tpu_custom_call.1} parent=1 // pred_check
      _
    $region3: #{tpu_custom_call.1} parent=1 // pred_check_branch
      %12 = sbr.rel (0) target = $region5
    $region4: #{tpu_custom_call.1} parent=1 // pred_region
      %14 = vsyncadd [#allocation3], 0
      %s15 = sshll.u32 %s0, 4
      %s16 = int_to_ptr.hbm [resolvable:$true] %s15
      %s17 = sshll.u32 [#allocation2], 4
      %s18 = int_to_ptr.vmem [resolvable:$true] %s17
      %23 = dma.hbm_to_vmem [thread:$0]  %s16, 384, %s18, [#allocation3], 128, 128, 8
    $region5: #{tpu_custom_call.1} parent=1 // pred_fallthru
      _
    // Predicated region
    $region6: #{tpu_custom_call.1} parent=1 // pred_check
      _
    $region7: #{tpu_custom_call.1} parent=1 // pred_check_branch
      %25 = sbr.rel (0) target = $region9
    $region8: #{tpu_custom_call.1} parent=1 // pred_region
      %27 = vsyncadd [#allocation6], 0
      %s28 = sshll.u32 %s1, 4
      %s29 = int_to_ptr.hbm [resolvable:$true] %s28
      %s30 = sshll.u32 [#allocation5], 4
      %s31 = int_to_ptr.vmem [resolvable:$true] %s30
      %36 = dma.hbm_to_vmem [thread:$0]  %s29, 192, %s31, [#allocation6], 64, 64, 4
    $region9: #{tpu_custom_call.1} parent=1 // pred_fallthru
      _
    // Predicated region
    $region10: #{tpu_custom_call.1} parent=1 // pred_check
      _
    $region11: #{tpu_custom_call.1} parent=1 // pred_check_branch
      %38 = sbr.rel (0) target = $region13
    $region12: #{tpu_custom_call.1} parent=1 // pred_region
      %40 = vsyncadd [#allocation6], 0
      %s42 = sshll.u32 %s2, 4
      %s43 = int_to_ptr.hbm [resolvable:$true] %s42
      %s44 = sshll.u32 [#allocation7], 4
      %s45 = int_to_ptr.vmem [resolvable:$true] %s44
      %47 = dma.hbm_to_vmem [thread:$0]  %s43, 64, %s45, [#allocation6]
    $region13: #{tpu_custom_call.1} parent=1 // pred_fallthru
      _
    // Predicated region
    $region14: #{tpu_custom_call.1} parent=1 // pred_check
      _
    $region15: #{tpu_custom_call.1} parent=1 // pred_check_branch
      %49 = sbr.rel (0) target = $region17
    $region16: #{tpu_custom_call.1} parent=1 // pred_region
      %51 = dma.done [#allocation3], 384
    $region17: #{tpu_custom_call.1} parent=1 // pred_fallthru
      _
    // Predicated region
    $region18: #{tpu_custom_call.1} parent=1 // pred_check
      _
    $region19: #{tpu_custom_call.1} parent=1 // pred_check_branch
      %53 = sbr.rel (0) target = $region21
    $region20: #{tpu_custom_call.1} parent=1 // pred_region
      %55 = dma.done [#allocation6], 192
    $region21: #{tpu_custom_call.1} parent=1 // pred_fallthru
      _
    // Predicated region
    $region22: #{tpu_custom_call.1} parent=1 // pred_check
      _
    $region23: #{tpu_custom_call.1} parent=1 // pred_check_branch
      %57 = sbr.rel (0) target = $region25
    $region24: #{tpu_custom_call.1} parent=1 // pred_region
      %59 = dma.done [#allocation6], 64
    $region25: #{tpu_custom_call.1} parent=1 // pred_fallthru
      _
    %v60 = vld [vmem:[#allocation2] sm:$0x7f]
    %v61 = vld [vmem:[#allocation2 + $0x8] sm:$0x7f]
    %v62 = vld [vmem:[#allocation2 + $0x10] sm:$0x7f]
    %v63 = vld [vmem:[#allocation5] sm:$0xf]
    %v64 = vld [vmem:[#allocation5 + $0x4] sm:$0xf]
    %v65 = vld [vmem:[#allocation5 + $0x8] sm:$0xf]
    %v66 = vld [vmem:[#allocation7] sm:$0x7]
    %v67 = vcvt.f32.s32.to.zero.pseudo %v66
    %v68 = vlaneseq
    %v69 = vshrl.u32 %v68, 7
    %v70 = vperm.slane %v67, 0
    %vm71 = vcmp.eq.s32.totalorder %v69, %v70
    %v72 = vsel %vm71, 1, 0
    %v73 = vrot.slane %v72, 1
    %v74 = vrot.slane %v72, 2
    %vm75 = vcmp.ne.s32.totalorder %v73, 0
    %vm76 = vcmp.ne.s32.totalorder %v74, 0
    %v77 = vsel %vm75, 1, 0
    %v78 = vsel %vm76, 1, 0
    %v79 = vperm.slane %v72, 0
    %v80 = vperm.slane %v77, 0
    %v81 = vperm.slane %v78, 0
    %vm82 = vcmp.eq.s32.totalorder %v79, 1
    %vm83 = vcmp.eq.s32.totalorder %v80, 1
    %vm84 = vcmp.eq.s32.totalorder %v81, 1
    %v85 = vsel %vm82, %v63, 0.0
    %v86 = vsel %vm83, %v63, 0.0
    %v87 = vsel %vm84, %v63, 0.0
    %v88 = vsel %vm71, 1.0, 0.0
    %v89 = vperm.slane %v67, 1
    %vm90 = vcmp.eq.s32.totalorder %v69, %v89
    %v91 = vsel %vm90, 1, 0
    %v92 = vrot.slane %v91, 1
    %v93 = vrot.slane %v91, 2
    %vm94 = vcmp.ne.s32.totalorder %v92, 0
    %vm95 = vcmp.ne.s32.totalorder %v93, 0
    %v96 = vsel %vm94, 1, 0
    %v97 = vsel %vm95, 1, 0
    %v98 = vperm.slane %v91, 0
    %v99 = vperm.slane %v96, 0
    %v100 = vperm.slane %v97, 0
    %vm101 = vcmp.eq.s32.totalorder %v98, 1
    %vm102 = vcmp.eq.s32.totalorder %v99, 1
    %vm103 = vcmp.eq.s32.totalorder %v100, 1
    %v104 = vsel %vm101, %v64, %v85
    %v105 = vsel %vm102, %v64, %v86
    %v106 = vsel %vm103, %v64, %v87
    %v107 = vsel %vm90, 1.0, %v88
    %v108 = vperm.slane %v67, 2
    %vm109 = vcmp.eq.s32.totalorder %v69, %v108
    %v110 = vsel %vm109, 1, 0
    %v111 = vrot.slane %v110, 1
    %v112 = vrot.slane %v110, 2
    %vm113 = vcmp.ne.s32.totalorder %v111, 0
    %vm114 = vcmp.ne.s32.totalorder %v112, 0
    %v115 = vsel %vm113, 1, 0
    %v116 = vsel %vm114, 1, 0
    %v117 = vperm.slane %v110, 0
    %v118 = vperm.slane %v115, 0
    %v119 = vperm.slane %v116, 0
    %vm120 = vcmp.eq.s32.totalorder %v117, 1
    %vm121 = vcmp.eq.s32.totalorder %v118, 1
    %vm122 = vcmp.eq.s32.totalorder %v119, 1
    %v123 = vsel %vm120, %v65, %v104
    %v124 = vsel %vm121, %v65, %v105
    %v125 = vsel %vm122, %v65, %v106
    %v126 = vsel %vm109, 1.0, %v107
    %v127 = vsub.f32 %v60, %v123
    %v128 = vsub.f32 %v61, %v124
    %v129 = vsub.f32 %v62, %v125
    %v130 = vmul.f32 %v127, %v127
    %v131 = vmul.f32 %v128, %v128
    %v132 = vmul.f32 %v129, %v129
    %v136 = vrot.slane %v130, 1
    %v137 = vrot.slane %v131, 1
    %v138 = vrot.slane %v132, 1
    %vm142 = vcmask 1042432
    %v143 = vsel %vm142, %v136, 0.0
    %v144 = vsel %vm142, %v137, 0.0
    %v145 = vadd.f32 %v143, %v144
    %v146 = vsel %vm142, %v138, 0.0
    %v147 = vadd.f32 %v145, %v146
    %v148 = vrot.slane %v147, 4
    %v149 = vadd.f32 %v147, %v148
    %v150 = vrot.slane %v149, 2
    %v151 = vadd.f32 %v149, %v150
    %v152 = vrot.slane %v151, 1
    %v153 = vadd.f32 %v151, %v152
    %v154 = vmul.f32 %v153, 0.33333334
    %vm155 = vcmask 1040384
    %v156 = vsel %vm155, %v60, -inf
    %v157 = vsel %vm155, %v61, -inf
    %v158 = vsel %vm155, %v62, -inf
    %v159 = vmax.f32 %v156, %v157
    %v160 = vmax.f32 %v159, %v158
    %v161 = vperm.slane %v160, 0
    %v162 = vsub.f32 %v60, %v161
    %v163 = vsub.f32 %v61, %v161
    %v164 = vsub.f32 %v62, %v161
    %v165 = vmul.f32 %v162, 1.442695
    %v166 = vpow.pop %v165
    %v167 = vmul.f32 %v163, 1.442695
    %v168 = vpow.pop %v167
    %v169 = vmul.f32 %v164, 1.442695
    %v170 = vpow.pop %v169
    %v174 = vrot.slane %v168, 7
    %vm175 = vcmask 1041409
    %v176 = vsel %vm175, %v174, %v166
    %v177 = vrot.slane %v170, 6
    %vm178 = vcmask 1042434
    %v179 = vsel %vm178, %v177, %v176
    %v181 = vsel %vm142, %v179, 0.0
    %v182 = vrot.slane %v181, 4
    %v183 = vadd.f32 %v181, %v182
    %v184 = vrot.slane %v183, 2
    %v185 = vadd.f32 %v183, %v184
    %v186 = vrot.slane %v185, 1
    %v187 = vadd.f32 %v185, %v186
    %v188 = vlog2.pop %v187
    %v189 = vmul.f32 %v188, 0.6931472
    %v190 = vadd.f32 %v160, %v189
    %v194 = vrot.slane %v124, 7
    %v195 = vsel %vm175, %v194, %v123
    %v196 = vrot.slane %v125, 6
    %v197 = vsel %vm178, %v196, %v195
    %v199 = vsel %vm142, %v197, 0.0
    %v200 = vrot.slane %v199, 4
    %v201 = vadd.f32 %v199, %v200
    %v202 = vrot.slane %v201, 2
    %v203 = vadd.f32 %v201, %v202
    %v204 = vrot.slane %v203, 1
    %v205 = vadd.f32 %v203, %v204
    %v206 = vmul.f32 %v190, %v205
    %v207 = vmul.f32 %v123, %v60
    %v208 = vmul.f32 %v124, %v61
    %v209 = vmul.f32 %v125, %v62
    %v213 = vrot.slane %v208, 7
    %v214 = vsel %vm175, %v213, %v207
    %v215 = vrot.slane %v209, 6
    %v216 = vsel %vm178, %v215, %v214
    %v218 = vsel %vm142, %v216, 0.0
    %v219 = vrot.slane %v218, 4
    %v220 = vadd.f32 %v218, %v219
    %v221 = vrot.slane %v220, 2
    %v222 = vadd.f32 %v220, %v221
    %v223 = vrot.slane %v222, 1
    %v224 = vadd.f32 %v222, %v223
    %v225 = vsub.f32 %v206, %v224
    %vm226 = vcmp.eq.s32.totalorder %v69, 0
    %vm227 = vcmp.eq.s32.totalorder %v69, 1
    %vm228 = vcmp.eq.s32.totalorder %v69, 2
    %v230 = vrot.slane %v126, 1
    %v231 = vrot.slane %v126, 2
    %v232 = vperm.slane %v126, 0
    %v233 = vperm.slane %v230, 0
    %v234 = vperm.slane %v231, 0
    %v238 = vsel %vm226, %v232, 0.0
    %v239 = vsel %vm227, %v233, 0.0
    %v240 = vsel %vm228, %v234, 0.0
    %vm241 = vcmask 1046532
    %v242 = vsel %vm241, %v60, -inf
    %v243 = vsel %vm241, %v61, -inf
    %v244 = vsel %vm241, %v62, -inf
    %v245 = vmax.f32 %v242, %v243
    %v246 = vmax.f32 %v245, %v244
    %v247 = vsub.f32 %v60, %v246
    %v248 = vsub.f32 %v61, %v246
    %v249 = vsub.f32 %v62, %v246
    %v250 = vmul.f32 %v247, 1.442695
    %v251 = vpow.pop %v250
    %v252 = vmul.f32 %v248, 1.442695
    %v253 = vpow.pop %v252
    %v254 = vmul.f32 %v249, 1.442695
    %v255 = vpow.pop %v254
    %v256 = vsel %vm241, %v251, 0.0
    %v257 = vsel %vm241, %v253, 0.0
    %v258 = vadd.f32 %v256, %v257
    %v259 = vsel %vm241, %v255, 0.0
    %v260 = vadd.f32 %v258, %v259
    %v261 = vlog2.pop %v260
    %v262 = vmul.f32 %v261, 0.6931472
    %v263 = vadd.f32 %v246, %v262
    %v264 = vsel %vm142, %v238, 0.0
    %v265 = vsel %vm142, %v239, 0.0
    %v266 = vadd.f32 %v264, %v265
    %v267 = vsel %vm142, %v240, 0.0
    %v268 = vadd.f32 %v266, %v267
    %v270 = vrot.slane %v268, 4
    %v272 = vmul.f32 %v263, %v270
    %v276 = vrot.slane %v60, 4
    %v277 = vrot.slane %v61, 4
    %v278 = vrot.slane %v62, 4
    %v282 = vmul.f32 %v238, %v276
    %v283 = vmul.f32 %v239, %v277
    %v284 = vmul.f32 %v240, %v278
    %v285 = vsel %vm142, %v282, 0.0
    %v286 = vsel %vm142, %v283, 0.0
    %v287 = vadd.f32 %v285, %v286
    %v288 = vsel %vm142, %v284, 0.0
    %v289 = vadd.f32 %v287, %v288
    %v291 = vrot.slane %v289, 4
    %v293 = vsub.f32 %v272, %v291
    %v295 = vrot.slane %v293, 4
    %v297 = vsel %vm142, %v295, 0.0
    %v298 = vrot.slane %v297, 4
    %v299 = vadd.f32 %v297, %v298
    %v300 = vrot.slane %v299, 2
    %v301 = vadd.f32 %v299, %v300
    %v302 = vrot.slane %v301, 1
    %v303 = vadd.f32 %v301, %v302
    %v304 = vadd.f32 %v225, %v303
    %v305 = vmul.f32 %v304, 0.25
    %v306 = vmul.f32 %v305, 5.0
    %v307 = vadd.f32 %v154, %v306
    %308 = vst [vmem:[#allocation8] sm:$0x1] %v307
    // Predicated region
    $region26: #{tpu_custom_call.1} parent=1 // pred_check
      _
    $region27: #{tpu_custom_call.1} parent=1 // pred_check_branch
      %310 = sbr.rel (0) target = $region29
    $region28: #{tpu_custom_call.1} parent=1 // pred_region
      %312 = vsyncadd [#allocation4], 0
      %s314 = sshll.u32 [#allocation8], 4
      %s315 = int_to_ptr.vmem [resolvable:$true] %s314
      %s316 = sshll.u32 %s3, 4
      %s317 = int_to_ptr.hbm [resolvable:$true] %s316
      %319 = dma.vmem_to_hbm [thread:$0]  %s315, 16, %s317, [#allocation4]
    $region29: #{tpu_custom_call.1} parent=1 // pred_fallthru
      _
    // Predicated region
    $region30: #{tpu_custom_call.1} parent=1 // pred_check
      _
    $region31: #{tpu_custom_call.1} parent=1 // pred_check_branch
      %321 = sbr.rel (0) target = $region33
    $region32: #{tpu_custom_call.1} parent=1 // pred_region
      %323 = dma.done [#allocation4], 16
    $region33: #{tpu_custom_call.1} parent=1 // pred_fallthru
      _
    %324 = vsyncpa [#allocation3], 1
    %325 = vsyncpa [#allocation6], 1
    %326 = vsyncpa [#allocation4], 1

</llo_original>
